<compile_context>
chip_gen: v6e
topology: v6e:2x2x1
jax: 0.10.0
libtpu: 0.0.40
codegen_flags: <defaults>
</compile_context>

<pallas_src>
import functools

import numpy as np
import jax
import jax.numpy as jnp
from jax.experimental import pallas as pl
from jax.experimental.pallas import tpu as pltpu


def _bins(in_size: int, out_size: int):
    """PyTorch adaptive-pool bin boundaries: start=floor(i*I/O), end=ceil((i+1)*I/O)."""
    return tuple(
        ((i * in_size) // out_size, -((-(i + 1) * in_size) // out_size))
        for i in range(out_size)
    )


def _pool_matrix(h: int, w: int, oh: int, ow: int, dtype) -> jax.Array:
    """Constant (OH*OW, H*W) matrix; row o has 1/bin_count over its adaptive bin."""
    bins_h = _bins(h, oh)
    bins_w = _bins(w, ow)
    p = np.zeros((oh * ow, h * w), dtype=np.float32)
    for i, (h0, h1) in enumerate(bins_h):
        for j, (w0, w1) in enumerate(bins_w):
            inv_cnt = 1.0 / float((h1 - h0) * (w1 - w0))
            for hh in range(h0, h1):
                p[i * ow + j, hh * w + w0:hh * w + w1] = inv_cnt
    return jnp.asarray(p, dtype=dtype)


def _pool_kernel(p_ref, x_ref, o_ref):
    # p_ref: (OHW, HW) pooling weights (constant per grid step)
    # x_ref: (1, HW, C_BLK) channels-last input tile (kept in input dtype)
    # o_ref: (1, OHW, C_BLK) lane-dense output tile
    acc = jnp.dot(p_ref[...], x_ref[0], preferred_element_type=jnp.float32)
    o_ref[0] = acc.astype(o_ref.dtype)


def _pick_channel_block(c: int) -> int:
    """Largest convenient lane-aligned channel block that evenly divides C."""
    if c % 128 != 0:
        return c  # must use the full extent to satisfy the (8,128)/full-dim rule
    for blk in (512, 256, 128):
        if c % blk == 0:
            return blk
    return c


def adaptive_avg_pool2d(x, output_size):
    """Equivalent of torch.nn.AdaptiveAvgPool2d(output_size) for NCHW input."""
    n, c, h, w = x.shape
    if isinstance(output_size, int):
        oh = ow = output_size
    else:
        oh, ow = output_size
        oh = h if oh is None else oh
        ow = w if ow is None else ow

    hw = h * w
    ohw = oh * ow
    c_blk = _pick_channel_block(c)
    num_c_blocks = c // c_blk

    # Channels-last, lane-dense compute layout: (N, H*W, C).
    x_cl = jnp.transpose(x, (0, 2, 3, 1)).reshape(n, hw, c)
    p = _pool_matrix(h, w, oh, ow, x.dtype)

    itemsize = jnp.dtype(x.dtype).itemsize
    cost = pl.CostEstimate(
        flops=2 * n * c * hw * ohw,
        transcendentals=0,
        bytes_accessed=n * c * (hw + ohw) * itemsize + ohw * hw * itemsize,
    )

    out_cl = pl.pallas_call(
        _pool_kernel,
        out_shape=jax.ShapeDtypeStruct((n, ohw, c), x.dtype),
        grid_spec=pl.GridSpec(
            grid=(n, num_c_blocks),
            in_specs=[
                pl.BlockSpec((ohw, hw), lambda ni, ci: (0, 0)),          # pooling matrix
                pl.BlockSpec((1, hw, c_blk), lambda ni, ci: (ni, 0, ci)),  # input tile
            ],
            out_specs=pl.BlockSpec((1, ohw, c_blk), lambda ni, ci: (ni, 0, ci)),
        ),
        compiler_params=pltpu.CompilerParams(
            dimension_semantics=("parallel", "parallel"),
        ),
        cost_estimate=cost,
    )(p, x_cl)

    # Back to PyTorch-identical NCHW.
    return jnp.transpose(out_cl.reshape(n, oh, ow, c), (0, 3, 1, 2))


def _ref_adaptive_avg_pool2d(x, output_size):
    """Plain-JAX reference implementing the same floor/ceil bin rule."""
    n, c, h, w = x.shape
    if isinstance(output_size, int):
        oh = ow = output_size
    else:
        oh, ow = output_size
        oh = h if oh is None else oh
        ow = w if ow is None else ow
    rows = []
    for (h0, h1) in _bins(h, oh):
        cols = []
        for (w0, w1) in _bins(w, ow):
            cols.append(jnp.mean(x[:, :, h0:h1, w0:w1], axis=(2, 3)))
        rows.append(jnp.stack(cols, axis=-1))
    return jnp.stack(rows, axis=-2)


if __name__ == "__main__":
    key = jax.random.PRNGKey(0)
    # Small NCHW input consistent with mobilenet_v3 usage (output_size=1 -> global avg pool).
    x = jax.random.normal(key, (2, 4, 16, 16), dtype=jnp.float32)

    # Case 1: global average pool (the mobilenet_v3 use).
    out = adaptive_avg_pool2d(x, output_size=1)
    out = jax.block_until_ready(out)
    ref = jnp.mean(x, axis=(2, 3), keepdims=True)
    assert out.shape == (2, 4, 1, 1), out.shape
    assert jnp.allclose(out, ref, atol=1e-5, rtol=1e-5), "mismatch vs global-pool ref"

    # Case 2: generic adaptive bins (non-divisible output size).
    out2 = adaptive_avg_pool2d(x, output_size=(3, 5))
    out2 = jax.block_until_ready(out2)
    ref2 = _ref_adaptive_avg_pool2d(x, (3, 5))
    assert out2.shape == (2, 4, 3, 5), out2.shape
    assert jnp.allclose(out2, ref2, atol=1e-5, rtol=1e-5), "mismatch vs adaptive ref"

    print("KERNEL_OK")
</pallas_src>

<mosaic_0001>
module attributes {stable_mosaic.version = 11 : i64} {
  func.func @_pool_kernel(%arg0: i32, %arg1: i32, %arg2: memref<1x256xf32, #tpu.memory_space<vmem>>, %arg3: memref<1x256x4xf32, #tpu.memory_space<vmem>>, %arg4: memref<1x1x4xf32, #tpu.memory_space<vmem>>) attributes {dimension_semantics = [#tpu.dimension_semantics<parallel>, #tpu.dimension_semantics<parallel>], iteration_bounds = array<i64: 2, 1>, scalar_prefetch = 0 : i64, scratch_operands = 0 : i64, tpu.core_type = #tpu.core_type<tc>, window_params = [{pipeline_mode = #tpu.pipeline_mode<synchronous>, transform_indices = @transform_0, window_bounds = array<i64: 1, 256>}, {transform_indices = @transform_1, window_bounds = array<i64: 1, 256, 4>}, {transform_indices = @transform_2, window_bounds = array<i64: 1, 1, 4>}]} {
    %c0 = arith.constant 0 : index
    %c0_0 = arith.constant 0 : index
    %0 = vector.load %arg2[%c0, %c0_0] : memref<1x256xf32, #tpu.memory_space<vmem>>, vector<1x256xf32>
    %c0_1 = arith.constant 0 : index
    %c0_2 = arith.constant 0 : index
    %c0_3 = arith.constant 0 : index
    %1 = vector.load %arg3[%c0_1, %c0_2, %c0_3] : memref<1x256x4xf32, #tpu.memory_space<vmem>>, vector<1x256x4xf32>
    %2 = vector.shape_cast %1 : vector<1x256x4xf32> to vector<256x4xf32>
    %cst = arith.constant dense<0.000000e+00> : vector<1x4xf32>
    %3 = tpu.matmul %0, %2, %cst {dimension_numbers = #tpu.dot_dimension_numbers<[1], [0], [0], [1], [0, 0, 1, 1], [], []>} : vector<1x256xf32>, vector<256x4xf32>, vector<1x4xf32> -> vector<1x4xf32>
    %c0_4 = arith.constant 0 : index
    %c0_5 = arith.constant 0 : index
    %c0_6 = arith.constant 0 : index
    %4 = vector.load %arg4[%c0_4, %c0_5, %c0_6] : memref<1x1x4xf32, #tpu.memory_space<vmem>>, vector<1x1x4xf32>
    %5 = vector.shape_cast %4 : vector<1x1x4xf32> to vector<1x4xf32>
    %6 = vector.shape_cast %3 : vector<1x4xf32> to vector<1x1x4xf32>
    tpu.vector_store %arg4[%c0_4, %c0_5, %c0_6], %6 {strides = array<i32>} : memref<1x1x4xf32, #tpu.memory_space<vmem>>, vector<1x1x4xf32>,
    return
  }
  func.func @transform_0(%arg0: i32, %arg1: i32) -> (i32, i32) {
    %c0_i32 = arith.constant 0 : i32
    %c0_i32_0 = arith.constant 0 : i32
    %c0_i32_1 = arith.constant 0 : i32
    return %c0_i32, %c0_i32_0 : i32, i32
  }
  func.func @transform_1(%arg0: i32, %arg1: i32) -> (i32, i32, i32) {
    %c0_i32 = arith.constant 0 : i32
    %c0_i32_0 = arith.constant 0 : i32
    return %arg0, %c0_i32, %arg1 : i32, i32, i32
  }
  func.func @transform_2(%arg0: i32, %arg1: i32) -> (i32, i32, i32) {
    %c0_i32 = arith.constant 0 : i32
    %c0_i32_0 = arith.constant 0 : i32
    return %arg0, %c0_i32, %arg1 : i32, i32, i32
  }
}

</mosaic_0001>

<llo_original>
// kernel: tpu_custom_call.1
$region0: #{tpu_custom_call.1}
  #allocation0 [shape = 'u32[]', space=smem, size = 0x4, offset = 0x4, fixed_abs, tag = 'smem constant byte address 0x4 - core index']
  #allocation1 [shape = 'u32[144,128]{1,0:T(1,128)}', space=vmem, size = 0x12000, scoped, tag = 'internal scratch']
  %s0 = inlined_call_operand.vmem [shape: f32[1,256], index: 0, kind: input, shape index: {}]
  %s1 = inlined_call_operand.vmem [shape: f32[2,256,4], index: 1, kind: input, shape index: {}]
  %s2 = inlined_call_operand.hbm [shape: f32[2,1,4], index: 2, kind: output, shape index: {}]
  %s3 = sld [smem:[#allocation0]]
  $region41: #{tpu_custom_call.1} parent=0
    _
  %s5 = ssub.s32 1, %s3
  %s6 = scalar_select 0, %s5, %s3
  $region1: #{tpu_custom_call.1} parent=0
    #allocation2 [shape = 'u8[1024]{0}', space=vmem, size = 0x400, scoped, tag = 'output window, operand 0']
    #allocation3 [shape = 's32[2]{0}', space=sflag, size = 0x8, scoped, tag = 'scoped memory for tpu_custom_call.1']
    %7 = vsyncpa [#allocation3], 0
    %s8 = scalar_lea.sflag [#allocation3], 1
    %9 = vsyncpa %s8, 0
    loop: start=0, step=1, limit=4
    $region2: #{tpu_custom_call.1} parent=1 // loop_pre_header
      _
    $region3: #{tpu_custom_call.1} parent=1 // loop_header
      %s11 = sphi 0, %s15
      %p12 = scmp.ge.s32.totalorder %s11, 4
      %s18 = sphi 0, %s30
      %s19 = sphi 0, %s26
      %s20 = sphi 0, %s18
      %s21 = sphi 0, %s19
      %s22 = sphi 0, %s20
      %s23 = sphi 0, %s21
      %s31 = sphi 0, %s31
      %s33 = sphi 0, %s31
      %s34 = sphi 0, %s33
      %s48 = sphi 0, %s34
      %s56 = sphi 0, %s58
      %s59 = sphi 0, %s56
      %s60 = sphi 0, %s59
      %s76 = sphi 0, %s60
      %s84 = sphi 0, %s86
      %s87 = sphi 0, %s84
      %s88 = sphi 0, %s87
      %s104 = sphi 0, %s88
    $region4: #{tpu_custom_call.1} parent=1 // loop_header_branch
      %14 = sbr.rel (%p12) target = $region8
    $region5: #{tpu_custom_call.1} parent=1 // loop_body
      %s16 = ssub.s32 %s11, 1
      %s17 = ssub.s32 %s11, 2
      %s24 = sadd.s32 1, %s19
      %p25 = scmp.ge.s32.totalorder %s24, 1
      %s26 = scalar_select %p25, 0, %s24
      %s27 = sadd.s32 1, %s18
      %s28 = scalar_select %p25, %s27, %s18
      %p29 = scmp.ge.s32.totalorder %s28, 2
      %s30 = scalar_select %p29, 0, %s28
      %s32 = sadd.s32 %s31, 1
      %p35 = scmp.eq.s32.totalorder %s11, 1
      %p36 = scmp.ne.s32.totalorder %s31, %s33
      %p37 = scmp.eq.s32.totalorder %s11, 0
      %p38 = por %p36, %p37
      %p39 = scmp.ne.s32.totalorder %s31, %s33
      %p40 = scmp.eq.s32.totalorder %s16, 1
      %p41 = por %p39, %p40
      %p42 = scmp.ne.s32.totalorder %s33, %s34
      %p43 = scmp.eq.s32.totalorder %s16, 0
      %p44 = por %p42, %p43
      %p45 = scmp.ne.s32.totalorder %s33, %s34
      %p46 = scmp.eq.s32.totalorder %s17, 1
      %p47 = por %p45, %p46
      %p49 = scmp.ne.s32.totalorder %s34, %s48
      %p50 = scmp.eq.s32.totalorder %s17, 0
      %p51 = por %p49, %p50
      %s52 = ssub.s32 %s18, %s30
      %s53 = ssub.s32 %s19, %s26
      %s54 = sor.u32 %s52, %s53
      %p55 = scmp.eq.s32.totalorder %s54, 0
      %s57 = sadd.s32 %s56, 1
      %s58 = scalar_select %p55, %s56, %s57
      %p61 = pneg %p55
      %p62 = scmp.eq.s32.totalorder %s11, 1
      %p63 = por %p61, %p62
      %p64 = scmp.ne.s32.totalorder %s56, %s59
      %p65 = scmp.eq.s32.totalorder %s11, 0
      %p66 = por %p64, %p65
      %p67 = scmp.ne.s32.totalorder %s56, %s59
      %p68 = scmp.eq.s32.totalorder %s16, 1
      %p69 = por %p67, %p68
      %p70 = scmp.ne.s32.totalorder %s59, %s60
      %p71 = scmp.eq.s32.totalorder %s16, 0
      %p72 = por %p70, %p71
      %p73 = scmp.ne.s32.totalorder %s59, %s60
      %p74 = scmp.eq.s32.totalorder %s17, 1
      %p75 = por %p73, %p74
      %p77 = scmp.ne.s32.totalorder %s60, %s76
      %p78 = scmp.eq.s32.totalorder %s17, 0
      %p79 = por %p77, %p78
      %s80 = ssub.s32 %s18, %s30
      %s81 = ssub.s32 %s19, %s26
      %s82 = sor.u32 %s80, %s81
      %p83 = scmp.eq.s32.totalorder %s82, 0
      %s85 = sadd.s32 %s84, 1
      %s86 = scalar_select %p83, %s84, %s85
      %p89 = pneg %p83
      %p90 = scmp.eq.s32.totalorder %s11, 1
      %p91 = por %p89, %p90
      %p92 = scmp.ne.s32.totalorder %s84, %s87
      %p93 = scmp.eq.s32.totalorder %s11, 0
      %p94 = por %p92, %p93
      %p95 = scmp.ne.s32.totalorder %s84, %s87
      %p96 = scmp.eq.s32.totalorder %s16, 1
      %p97 = por %p95, %p96
      %p98 = scmp.ne.s32.totalorder %s87, %s88
      %p99 = scmp.eq.s32.totalorder %s16, 0
      %p100 = por %p98, %p99
      %p101 = scmp.ne.s32.totalorder %s87, %s88
      %p102 = scmp.eq.s32.totalorder %s17, 1
      %p103 = por %p101, %p102
      %p105 = scmp.ne.s32.totalorder %s88, %s104
      %p106 = scmp.eq.s32.totalorder %s17, 0
      %p107 = por %p105, %p106
      %p108 = scmp.le.s32.totalorder 1, %s11
      %p109 = scmp.lt.s32.totalorder %s11, 3
      %p110 = pnand %p108, %p109
      %p111 = pneg %p110
      // Predicated region
      $region9: #{tpu_custom_call.1} parent=5 // pred_check
        _
      $region10: #{tpu_custom_call.1} parent=5 // pred_check_branch
        %113 = sbr.rel (%p110) target = $region12
      $region11: #{tpu_custom_call.1} parent=5 // pred_region
        %s114 = ssub.s32 %s11, 1
        // Predicated region
        $region13: #{tpu_custom_call.1} parent=11 // pred_check
          %p115 = pneg %p44
        $region14: #{tpu_custom_call.1} parent=11 // pred_check_branch
          %117 = sbr.rel (%p115) target = $region16
        $region15: #{tpu_custom_call.1} parent=11 // pred_region
          _
        $region16: #{tpu_custom_call.1} parent=11 // pred_fallthru
          _
      $region12: #{tpu_custom_call.1} parent=5 // pred_fallthru
        _
      %p118 = scmp.lt.s32.totalorder %s11, 2
      // Predicated region
      $region17: #{tpu_custom_call.1} parent=5 // pred_check
        %p119 = pneg %p118
      $region18: #{tpu_custom_call.1} parent=5 // pred_check_branch
        %121 = sbr.rel (%p119) target = $region20
      $region19: #{tpu_custom_call.1} parent=5 // pred_region
        // Predicated region
        $region21: #{tpu_custom_call.1} parent=19 // pred_check
          %p122 = pneg %p66
        $region22: #{tpu_custom_call.1} parent=19 // pred_check_branch
          %124 = sbr.rel (%p122) target = $region24
        $region23: #{tpu_custom_call.1} parent=19 // pred_region
          %p125 = scmp.lt.s32.totalorder %s18, 1
          %s126 = scalar_select %p125, %s18, 1
          %p127 = scmp.lt.s32.totalorder %s19, 0
          %s128 = scalar_select %p127, %s19, 0
          %s129 = smul.addr %s126, 32
          %s130 = sadd.s32 %s128, %s129
          %s131 = smul.addr %s130, 8
          %s132 = scalar_lea.vmem %s1, %s131
        $region24: #{tpu_custom_call.1} parent=19 // pred_fallthru
          _
      $region20: #{tpu_custom_call.1} parent=5 // pred_fallthru
        _
      %p133 = scmp.le.s32.totalorder 1, %s11
      %p134 = scmp.lt.s32.totalorder %s11, 3
      %p135 = pnand %p133, %p134
      %p136 = pneg %p135
      // Predicated region
      $region25: #{tpu_custom_call.1} parent=5 // pred_check
        _
      $region26: #{tpu_custom_call.1} parent=5 // pred_check_branch
        %138 = sbr.rel (%p135) target = $region28
      $region27: #{tpu_custom_call.1} parent=5 // pred_region
        %s139 = ssub.s32 %s11, 1
        %p140 = pneg %p44
        %p141 = pneg %p41
        %p142 = scmp.lt.s32.totalorder %s20, 1
        %s143 = scalar_select %p142, %s20, 1
        %p144 = scmp.lt.s32.totalorder %s21, 0
        %s145 = scalar_select %p144, %s21, 0
        %s146 = smul.addr %s143, 32
        %s147 = sadd.s32 %s145, %s146
        %s148 = smul.addr %s147, 8
        %s149 = scalar_lea.vmem %s1, %s148
        %p150 = pneg %p72
        %p151 = pneg %p69
        %p152 = pneg %p100
        %p153 = pneg %p97
        %s154 = sand.u32 %s87, 1
        %s155 = scalar_lea.sflag [#allocation3], %s154
        %s156 = sand.u32 %s87, 1
        %s157 = scalar_lea.vmem [#allocation2], %s156
        %p158 = scmp.lt.s32.totalorder %s20, 1
        %s159 = scalar_select %p158, %s20, 1
        %p160 = scmp.lt.s32.totalorder %s21, 0
        %s161 = scalar_select %p160, %s21, 0
        %s162 = smul.addr %s159, 32
        %s163 = sadd.s32 %s161, %s162
        %s164 = smul.addr %s163, 8
        %s165 = scalar_lea.vmem %s1, %s164
        %v166 = vld [vmem:[%s0] sm:$0x3]
        %v167 = vld [vmem:[%s165] sm:$0xff]
        %v168 = vld [vmem:[%s165 + $0x8] sm:$0xff]
        %v169 = vld [vmem:[%s165 + $0x10] sm:$0xff]
        %v170 = vld [vmem:[%s165 + $0x18] sm:$0xff]
        %v171 = vld [vmem:[%s165 + $0x20] sm:$0xff]
        %v172 = vld [vmem:[%s165 + $0x28] sm:$0xff]
        %v173 = vld [vmem:[%s165 + $0x30] sm:$0xff]
        %v174 = vld [vmem:[%s165 + $0x38] sm:$0xff]
        %v175 = vld [vmem:[%s165 + $0x40] sm:$0xff]
        %v176 = vld [vmem:[%s165 + $0x48] sm:$0xff]
        %v177 = vld [vmem:[%s165 + $0x50] sm:$0xff]
        %v178 = vld [vmem:[%s165 + $0x58] sm:$0xff]
        %v179 = vld [vmem:[%s165 + $0x60] sm:$0xff]
        %v180 = vld [vmem:[%s165 + $0x68] sm:$0xff]
        %v181 = vld [vmem:[%s165 + $0x70] sm:$0xff]
        %v182 = vld [vmem:[%s165 + $0x78] sm:$0xff]
        %v183 = vld [vmem:[%s165 + $0x80] sm:$0xff]
        %v184 = vld [vmem:[%s165 + $0x88] sm:$0xff]
        %v185 = vld [vmem:[%s165 + $0x90] sm:$0xff]
        %v186 = vld [vmem:[%s165 + $0x98] sm:$0xff]
        %v187 = vld [vmem:[%s165 + $0xa0] sm:$0xff]
        %v188 = vld [vmem:[%s165 + $0xa8] sm:$0xff]
        %v189 = vld [vmem:[%s165 + $0xb0] sm:$0xff]
        %v190 = vld [vmem:[%s165 + $0xb8] sm:$0xff]
        %v191 = vld [vmem:[%s165 + $0xc0] sm:$0xff]
        %v192 = vld [vmem:[%s165 + $0xc8] sm:$0xff]
        %v193 = vld [vmem:[%s165 + $0xd0] sm:$0xff]
        %v194 = vld [vmem:[%s165 + $0xd8] sm:$0xff]
        %v195 = vld [vmem:[%s165 + $0xe0] sm:$0xff]
        %v196 = vld [vmem:[%s165 + $0xe8] sm:$0xff]
        %v197 = vld [vmem:[%s165 + $0xf0] sm:$0xff]
        %v198 = vld [vmem:[%s165 + $0xf8] sm:$0xff]
        %v200 = vlaneseq
        %v201 = vshrl.u32 %v200, 7
        %v202 = vsub.s32 0, %v201
        %v203 = vrot.slane %v166, %v202
        %v204 = vlaneseq
        %v205 = vshrl.u32 %v204, 7
        %v206 = vsub.s32 1, %v205
        %v207 = vrot.slane %v166, %v206
        %210 = vmatprep.subr.mxu0 0.0
        %211 = vmatpush1.msra.mxu0 %v182
        %212 = vmatprep.subr.mxu0 0.0
        %213 = vmatpush1.msra.mxu0 %v181
        %214 = vmatprep.subr.mxu0 0.0
        %215 = vmatpush1.msra.mxu0 %v180
        %216 = vmatprep.subr.mxu0 0.0
        %217 = vmatpush1.msra.mxu0 %v179
        %218 = vmatprep.subr.mxu0 0.0
        %219 = vmatpush1.msra.mxu0 %v178
        %220 = vmatprep.subr.mxu0 0.0
        %221 = vmatpush1.msra.mxu0 %v177
        %222 = vmatprep.subr.mxu0 0.0
        %223 = vmatpush1.msra.mxu0 %v176
        %224 = vmatprep.subr.mxu0 0.0
        %225 = vmatpush1.msra.mxu0 %v175
        %226 = vmatprep.subr.mxu0 0.0
        %227 = vmatpush1.msra.mxu0 %v174
        %228 = vmatprep.subr.mxu0 0.0
        %229 = vmatpush1.msra.mxu0 %v173
        %230 = vmatprep.subr.mxu0 0.0
        %231 = vmatpush1.msra.mxu0 %v172
        %232 = vmatprep.subr.mxu0 0.0
        %233 = vmatpush1.msra.mxu0 %v171
        %234 = vmatprep.subr.mxu0 0.0
        %235 = vmatpush1.msra.mxu0 %v170
        %236 = vmatprep.subr.mxu0 0.0
        %237 = vmatpush1.msra.mxu0 %v169
        %238 = vmatprep.subr.mxu0 0.0
        %239 = vmatpush1.msra.mxu0 %v168
        %240 = vmatprep.subr.mxu0 0.0
        %241 = vmatpush1.msra.mxu0 %v167
        %242 = vmatprep.subr.mxu0 0.0
        %243 = vmatpush2.msra.mxu0 %v198
        %244 = vmatprep.subr.mxu0 0.0
        %245 = vmatpush2.msra.mxu0 %v197
        %246 = vmatprep.subr.mxu0 0.0
        %247 = vmatpush2.msra.mxu0 %v196
        %248 = vmatprep.subr.mxu0 0.0
        %249 = vmatpush2.msra.mxu0 %v195
        %250 = vmatprep.subr.mxu0 0.0
        %251 = vmatpush2.msra.mxu0 %v194
        %252 = vmatprep.subr.mxu0 0.0
        %253 = vmatpush2.msra.mxu0 %v193
        %254 = vmatprep.subr.mxu0 0.0
        %255 = vmatpush2.msra.mxu0 %v192
        %256 = vmatprep.subr.mxu0 0.0
        %257 = vmatpush2.msra.mxu0 %v191
        %258 = vmatprep.subr.mxu0 0.0
        %259 = vmatpush2.msra.mxu0 %v190
        %260 = vmatprep.subr.mxu0 0.0
        %261 = vmatpush2.msra.mxu0 %v189
        %262 = vmatprep.subr.mxu0 0.0
        %263 = vmatpush2.msra.mxu0 %v188
        %264 = vmatprep.subr.mxu0 0.0
        %265 = vmatpush2.msra.mxu0 %v187
        %266 = vmatprep.subr.mxu0 0.0
        %267 = vmatpush2.msra.mxu0 %v186
        %268 = vmatprep.subr.mxu0 0.0
        %269 = vmatpush2.msra.mxu0 %v185
        %270 = vmatprep.subr.mxu0 0.0
        %271 = vmatpush2.msra.mxu0 %v184
        %272 = vmatprep.subr.mxu0 0.0
        %273 = vmatpush2.msra.mxu0 %v183
        %274 = vmatprep.mubr.f32.mxu0 %v207
        %275 = vmatmul.mubr.f32.gmra.mxu0 %v203
        %v276 = vpop.f32.mrf.mxu0
        %v277 = vadd.f32 0.0, %v276
        %v278 = vpop.f32.mrf.mxu0
        %279 = vdwg.mxu0
        %vm280 = vcmask 24576
        %281 = vst.msk [vmem:[%s157] sm:$0x1] %vm280, %v277
        %s282 = sand.u32 %s87, 1
        %s283 = scalar_lea.sflag [#allocation3], %s282
        %s284 = sand.u32 %s87, 1
        %s285 = scalar_lea.vmem [#allocation2], %s284
        // Predicated region
        $region29: #{tpu_custom_call.1} parent=27 // pred_check
          %p286 = pneg %p97
        $region30: #{tpu_custom_call.1} parent=27 // pred_check_branch
          %288 = sbr.rel (%p286) target = $region32
        $region31: #{tpu_custom_call.1} parent=27 // pred_region
          %s290 = ssub.s32 16, 16
          %291 = vsyncadd %s283, %s290
          %s292 = sadd.s32 %s21, %s20
          %s293 = smul.addr %s292, 16
          %s294 = scalar_lea.hbm %s2, %s293
          %s296 = sshll.u32 %s285, 4
          %s297 = int_to_ptr.vmem [resolvable:$true] %s296
          %299 = dma.vmem_to_hbm [thread:$0]  %s297, 16, %s294, %s283
        $region32: #{tpu_custom_call.1} parent=27 // pred_fallthru
          _
      $region28: #{tpu_custom_call.1} parent=5 // pred_fallthru
        _
      %p300 = scmp.le.s32.totalorder 2, %s11
      // Predicated region
      $region33: #{tpu_custom_call.1} parent=5 // pred_check
        %p301 = pneg %p300
      $region34: #{tpu_custom_call.1} parent=5 // pred_check_branch
        %303 = sbr.rel (%p301) target = $region36
      $region35: #{tpu_custom_call.1} parent=5 // pred_region
        %s304 = ssub.s32 %s11, 2
        // Predicated region
        $region37: #{tpu_custom_call.1} parent=35 // pred_check
          %p305 = pneg %p103
        $region38: #{tpu_custom_call.1} parent=35 // pred_check_branch
          %307 = sbr.rel (%p305) target = $region40
        $region39: #{tpu_custom_call.1} parent=35 // pred_region
          %s308 = sand.u32 %s88, 1
          %s309 = scalar_lea.sflag [#allocation3], %s308
          %s310 = sand.u32 %s88, 1
          %s311 = scalar_lea.vmem [#allocation2], %s310
          %312 = dma.done %s309, 16
        $region40: #{tpu_custom_call.1} parent=35 // pred_fallthru
          _
      $region36: #{tpu_custom_call.1} parent=5 // pred_fallthru
        _
    $region6: #{tpu_custom_call.1} parent=1 // loop_footer
      %s15 = sadd.s32 1, %s11
    $region7: #{tpu_custom_call.1} parent=1 // loop_footer_branch
      %10 = sbr.rel target = $region3
    $region8: #{tpu_custom_call.1} parent=1 // loop_exit
      _
    %313 = vsyncpa [#allocation3], 1
    %s314 = scalar_lea.sflag [#allocation3], 1
    %315 = vsyncpa %s314, 1

</llo_original>
